<compile_context>
chip_gen: v5e
topology: v5e:2x2
jax: 0.10.0
libtpu: 0.0.40
codegen_flags: <defaults>
</compile_context>

<pallas_src>
import functools

import jax
import jax.numpy as jnp
from jax.experimental import pallas as pl
from jax.experimental.pallas import tpu as pltpu


def _round_up(x, m):
    return (x + m - 1) // m * m


# -----------------------------------------------------------------------------
# Kernel A (per node-row block i):
#   ax     = A_hat[i, :] @ X                      (bf16 x bf16 -> f32 acc)
#   h      = relu(ax @ W1 + b1)
#   HW2[i] = h @ W2                               (stored bf16 for kernel B)
# -----------------------------------------------------------------------------
def _gcn_layer1_kernel(adj_ref, x_ref, w1_ref, b1_ref, w2_ref, hw2_ref):
    ax = jnp.dot(adj_ref[...], x_ref[...],
                 preferred_element_type=jnp.float32)            # (TM, Cin)
    h = jnp.dot(ax, w1_ref[...],
                preferred_element_type=jnp.float32) + b1_ref[...]
    h = jnp.maximum(h, 0.0)
    hw2 = jnp.dot(h, w2_ref[...], preferred_element_type=jnp.float32)
    hw2_ref[...] = hw2.astype(hw2_ref.dtype)


# -----------------------------------------------------------------------------
# Kernel B (per node-row block i):
#   h2 = A_hat[i, :] @ HW2 + b2                   (bf16 x bf16 -> f32 acc)
#   y  = sigmoid(h2 @ W3_pad + b3_pad)            (label dim padded to 128)
# -----------------------------------------------------------------------------
def _gcn_layer2_kernel(adj_ref, hw2_ref, b2_ref, w3_ref, b3_ref, out_ref):
    h2 = jnp.dot(adj_ref[...], hw2_ref[...],
                 preferred_element_type=jnp.float32) + b2_ref[...]
    y = jnp.dot(h2, w3_ref[...],
                preferred_element_type=jnp.float32) + b3_ref[...]
    out_ref[...] = jax.nn.sigmoid(y)


@functools.partial(jax.jit, static_argnames=("block_rows",))
def net_forward(adj_hat, x, params, *, block_rows=128):
    """Fused GCN -> GCN -> Linear -> sigmoid as two row-block-tiled Pallas calls."""
    w1, b1, w2, b2, w3, b3 = params
    n, cin = x.shape
    hidden = w1.shape[1]
    out_c = w2.shape[1]
    num_labels = w3.shape[1]

    lane = 128
    tm = block_rows
    n_pad = _round_up(n, tm)
    l_pad = _round_up(num_labels, lane)

    # Zero-pad node axis (inert rows/cols) and label lane axis; bf16 MXU inputs.
    adj_p = jnp.zeros((n_pad, n_pad), jnp.bfloat16)
    adj_p = adj_p.at[:n, :n].set(adj_hat.astype(jnp.bfloat16))
    x_p = jnp.zeros((n_pad, cin), jnp.bfloat16).at[:n, :].set(
        x.astype(jnp.bfloat16))
    w3_p = jnp.zeros((out_c, l_pad), jnp.float32).at[:, :num_labels].set(w3)
    b3_p = jnp.zeros((1, l_pad), jnp.float32).at[:, :num_labels].set(b3)

    grid = (n_pad // tm,)
    row_blk = lambda i: (i, 0)
    full = lambda i: (0, 0)

    cparams = pltpu.CompilerParams(
        dimension_semantics=("parallel",),       # megacore-shardable on v7x
        vmem_limit_bytes=32 * 1024 * 1024,       # explicit; safe on v5e/v6e/v7x
    )

    # ---- kernel A: HW2 = relu((A_hat @ X) @ W1 + b1) @ W2 -------------------
    cost_a = pl.CostEstimate(
        flops=2 * n_pad * n_pad * cin
              + 2 * n_pad * cin * hidden
              + 2 * n_pad * hidden * out_c,
        transcendentals=0,
        bytes_accessed=2 * n_pad * n_pad + 2 * n_pad * cin
                       + 4 * (cin * hidden + hidden + hidden * out_c)
                       + 2 * n_pad * out_c,
    )
    hw2 = pl.pallas_call(
        _gcn_layer1_kernel,
        grid=grid,
        in_specs=[
            pl.BlockSpec((tm, n_pad), row_blk),      # A_hat row block (streams)
            pl.BlockSpec((n_pad, cin), full),        # X        (resident)
            pl.BlockSpec((cin, hidden), full),       # W1
            pl.BlockSpec((1, hidden), full),         # b1
            pl.BlockSpec((hidden, out_c), full),     # W2
        ],
        out_specs=pl.BlockSpec((tm, out_c), row_blk),
        out_shape=jax.ShapeDtypeStruct((n_pad, out_c), jnp.bfloat16),
        compiler_params=cparams,
        cost_estimate=cost_a,
    )(adj_p, x_p, w1, b1, w2)

    # ---- kernel B: y = sigmoid((A_hat @ HW2 + b2) @ W3p + b3p) --------------
    cost_b = pl.CostEstimate(
        flops=2 * n_pad * n_pad * out_c + 2 * n_pad * out_c * l_pad,
        transcendentals=n_pad * l_pad,
        bytes_accessed=2 * n_pad * n_pad + 2 * n_pad * out_c
                       + 4 * (out_c + out_c * l_pad + l_pad)
                       + 4 * n_pad * l_pad,
    )
    out_p = pl.pallas_call(
        _gcn_layer2_kernel,
        grid=grid,
        in_specs=[
            pl.BlockSpec((tm, n_pad), row_blk),      # A_hat row block (streams)
            pl.BlockSpec((n_pad, out_c), full),      # HW2      (resident)
            pl.BlockSpec((1, out_c), full),          # b2
            pl.BlockSpec((out_c, l_pad), full),      # W3 (lane-padded)
            pl.BlockSpec((1, l_pad), full),          # b3 (lane-padded)
        ],
        out_specs=pl.BlockSpec((tm, l_pad), row_blk),   # lane-dense store
        out_shape=jax.ShapeDtypeStruct((n_pad, l_pad), jnp.float32),
        compiler_params=cparams,
        cost_estimate=cost_b,
    )(adj_p, hw2, b2, w3_p, b3_p)

    return out_p[:n, :num_labels]


def build_normalized_adjacency(edge_index, num_nodes):
    """Dense D^{-1/2} (A + I) D^{-1/2}  (PyG GCNConv default normalization)."""
    src, dst = edge_index
    a = jnp.zeros((num_nodes, num_nodes), jnp.float32)
    a = a.at[src, dst].set(1.0)
    a = a + jnp.eye(num_nodes, dtype=jnp.float32)       # add self loops
    deg = jnp.sum(a, axis=1)
    d_inv_sqrt = jnp.where(deg > 0, 1.0 / jnp.sqrt(deg), 0.0)
    return d_inv_sqrt[:, None] * a * d_inv_sqrt[None, :]


def init_params(key, in_channels, hidden_channels, out_channels, num_labels):
    k1, k2, k3 = jax.random.split(key, 3)
    # Weights stored as [fan_in, fan_out] (pre-transposed vs. torch layout).
    w1 = jax.random.normal(k1, (in_channels, hidden_channels), jnp.float32) * 0.2
    b1 = jnp.zeros((1, hidden_channels), jnp.float32)
    w2 = jax.random.normal(k2, (hidden_channels, out_channels), jnp.float32) * 0.2
    b2 = jnp.zeros((1, out_channels), jnp.float32)
    w3 = jax.random.normal(k3, (out_channels, num_labels), jnp.float32) * 0.2
    b3 = jnp.zeros((1, num_labels), jnp.float32)
    return (w1, b1, w2, b2, w3, b3)


def reference_forward(adj_hat, x, params):
    w1, b1, w2, b2, w3, b3 = params
    h = jnp.maximum(adj_hat @ (x @ w1) + b1, 0.0)
    h = adj_hat @ (h @ w2) + b2
    return jax.nn.sigmoid(h @ w3 + b3)


if __name__ == "__main__":
    num_nodes = 16
    in_channels = 4
    hidden_channels = 32
    out_channels = 16
    num_labels = 6          # stand-in for len(labels)

    key = jax.random.PRNGKey(0)
    k_x, k_p = jax.random.split(key)

    x = jax.random.normal(k_x, (num_nodes, in_channels), jnp.float32)

    # Deterministic ring graph (symmetric edges).
    src = jnp.arange(num_nodes, dtype=jnp.int32)
    dst = (src + 1) % num_nodes
    edge_index = jnp.stack(
        [jnp.concatenate([src, dst]), jnp.concatenate([dst, src])], axis=0)

    adj_hat = build_normalized_adjacency(edge_index, num_nodes)
    params = init_params(k_p, in_channels, hidden_channels, out_channels,
                         num_labels)

    out = net_forward(adj_hat, x, params)
    out = jax.block_until_ready(out)

    ref = reference_forward(adj_hat, x, params)
    assert out.shape == (num_nodes, num_labels)
    # Relaxed tolerance: MXU inputs are bf16 (f32 accumulation), reference is f32.
    assert jnp.allclose(out, ref, atol=3e-2, rtol=3e-2), (
        float(jnp.max(jnp.abs(out - ref))))
    print("KERNEL_OK")
</pallas_src>

<mosaic_0001>
module attributes {stable_mosaic.version = 11 : i64} {
  func.func @_gcn_layer2_kernel(%arg0: i32, %arg1: memref<128x128xbf16, #tpu.memory_space<vmem>>, %arg2: memref<128x16xbf16, #tpu.memory_space<vmem>>, %arg3: memref<1x16xf32, #tpu.memory_space<vmem>>, %arg4: memref<16x128xf32, #tpu.memory_space<vmem>>, %arg5: memref<1x128xf32, #tpu.memory_space<vmem>>, %arg6: memref<128x128xf32, #tpu.memory_space<vmem>>) attributes {dimension_semantics = [#tpu.dimension_semantics<parallel>], iteration_bounds = array<i64: 1>, scalar_prefetch = 0 : i64, scratch_operands = 0 : i64, tpu.core_type = #tpu.core_type<tc>, window_params = [{transform_indices = @transform_0, window_bounds = array<i64: 128, 128>}, {pipeline_mode = #tpu.pipeline_mode<synchronous>, transform_indices = @transform_1, window_bounds = array<i64: 128, 16>}, {pipeline_mode = #tpu.pipeline_mode<synchronous>, transform_indices = @transform_2, window_bounds = array<i64: 1, 16>}, {pipeline_mode = #tpu.pipeline_mode<synchronous>, transform_indices = @transform_3, window_bounds = array<i64: 16, 128>}, {pipeline_mode = #tpu.pipeline_mode<synchronous>, transform_indices = @transform_4, window_bounds = array<i64: 1, 128>}, {transform_indices = @transform_5, window_bounds = array<i64: 128, 128>}]} {
    %c0 = arith.constant 0 : index
    %c0_0 = arith.constant 0 : index
    %0 = vector.load %arg1[%c0, %c0_0] : memref<128x128xbf16, #tpu.memory_space<vmem>>, vector<128x128xbf16>
    %c0_1 = arith.constant 0 : index
    %c0_2 = arith.constant 0 : index
    %1 = vector.load %arg2[%c0_1, %c0_2] : memref<128x16xbf16, #tpu.memory_space<vmem>>, vector<128x16xbf16>
    %cst = arith.constant dense<0.000000e+00> : vector<128x16xf32>
    %2 = tpu.matmul %0, %1, %cst {dimension_numbers = #tpu.dot_dimension_numbers<[1], [0], [0], [1], [0, 0, 1, 1], [], []>} : vector<128x128xbf16>, vector<128x16xbf16>, vector<128x16xf32> -> vector<128x16xf32>
    %c0_3 = arith.constant 0 : index
    %c0_4 = arith.constant 0 : index
    %3 = vector.load %arg3[%c0_3, %c0_4] : memref<1x16xf32, #tpu.memory_space<vmem>>, vector<1x16xf32>
    %4 = vector.broadcast %3 : vector<1x16xf32> to vector<128x16xf32>
    %5 = arith.addf %2, %4 : vector<128x16xf32>
    %c0_5 = arith.constant 0 : index
    %c0_6 = arith.constant 0 : index
    %6 = vector.load %arg4[%c0_5, %c0_6] : memref<16x128xf32, #tpu.memory_space<vmem>>, vector<16x128xf32>
    %cst_7 = arith.constant dense<0.000000e+00> : vector<128x128xf32>
    %7 = tpu.matmul %5, %6, %cst_7 {dimension_numbers = #tpu.dot_dimension_numbers<[1], [0], [0], [1], [0, 0, 1, 1], [], []>} : vector<128x16xf32>, vector<16x128xf32>, vector<128x128xf32> -> vector<128x128xf32>
    %c0_8 = arith.constant 0 : index
    %c0_9 = arith.constant 0 : index
    %8 = vector.load %arg5[%c0_8, %c0_9] : memref<1x128xf32, #tpu.memory_space<vmem>>, vector<1x128xf32>
    %9 = vector.broadcast %8 : vector<1x128xf32> to vector<128x128xf32>
    %10 = arith.addf %7, %9 : vector<128x128xf32>
    %11 = arith.negf %10 : vector<128x128xf32>
    %12 = math.exp %11 : vector<128x128xf32>
    %cst_10 = arith.constant 1.000000e+00 : f32
    %13 = vector.broadcast %cst_10 : f32 to vector<128x128xf32>
    %14 = arith.addf %13, %12 : vector<128x128xf32>
    %15 = arith.divf %13, %14 : vector<128x128xf32>
    %c0_11 = arith.constant 0 : index
    %c0_12 = arith.constant 0 : index
    %16 = vector.load %arg6[%c0_11, %c0_12] : memref<128x128xf32, #tpu.memory_space<vmem>>, vector<128x128xf32>
    tpu.vector_store %arg6[%c0_11, %c0_12], %15 {strides = array<i32>} : memref<128x128xf32, #tpu.memory_space<vmem>>, vector<128x128xf32>,
    return
  }
  func.func @transform_0(%arg0: i32) -> (i32, i32) {
    %c0_i32 = arith.constant 0 : i32
    %c0_i32_0 = arith.constant 0 : i32
    return %arg0, %c0_i32 : i32, i32
  }
  func.func @transform_1(%arg0: i32) -> (i32, i32) {
    %c0_i32 = arith.constant 0 : i32
    %c0_i32_0 = arith.constant 0 : i32
    %c0_i32_1 = arith.constant 0 : i32
    return %c0_i32, %c0_i32_0 : i32, i32
  }
  func.func @transform_2(%arg0: i32) -> (i32, i32) {
    %c0_i32 = arith.constant 0 : i32
    %c0_i32_0 = arith.constant 0 : i32
    %c0_i32_1 = arith.constant 0 : i32
    return %c0_i32, %c0_i32_0 : i32, i32
  }
  func.func @transform_3(%arg0: i32) -> (i32, i32) {
    %c0_i32 = arith.constant 0 : i32
    %c0_i32_0 = arith.constant 0 : i32
    %c0_i32_1 = arith.constant 0 : i32
    return %c0_i32, %c0_i32_0 : i32, i32
  }
  func.func @transform_4(%arg0: i32) -> (i32, i32) {
    %c0_i32 = arith.constant 0 : i32
    %c0_i32_0 = arith.constant 0 : i32
    %c0_i32_1 = arith.constant 0 : i32
    return %c0_i32, %c0_i32_0 : i32, i32
  }
  func.func @transform_5(%arg0: i32) -> (i32, i32) {
    %c0_i32 = arith.constant 0 : i32
    %c0_i32_0 = arith.constant 0 : i32
    return %arg0, %c0_i32 : i32, i32
  }
}

module attributes {stable_mosaic.version = 11 : i64} {
  func.func @_gcn_layer1_kernel(%arg0: i32, %arg1: memref<128x128xbf16, #tpu.memory_space<vmem>>, %arg2: memref<128x4xbf16, #tpu.memory_space<vmem>>, %arg3: memref<4x32xf32, #tpu.memory_space<vmem>>, %arg4: memref<1x32xf32, #tpu.memory_space<vmem>>, %arg5: memref<32x16xf32, #tpu.memory_space<vmem>>, %arg6: memref<128x16xbf16, #tpu.memory_space<vmem>>) attributes {dimension_semantics = [#tpu.dimension_semantics<parallel>], iteration_bounds = array<i64: 1>, scalar_prefetch = 0 : i64, scratch_operands = 0 : i64, tpu.core_type = #tpu.core_type<tc>, window_params = [{transform_indices = @transform_0, window_bounds = array<i64: 128, 128>}, {pipeline_mode = #tpu.pipeline_mode<synchronous>, transform_indices = @transform_1, window_bounds = array<i64: 128, 4>}, {pipeline_mode = #tpu.pipeline_mode<synchronous>, transform_indices = @transform_2, window_bounds = array<i64: 4, 32>}, {pipeline_mode = #tpu.pipeline_mode<synchronous>, transform_indices = @transform_3, window_bounds = array<i64: 1, 32>}, {pipeline_mode = #tpu.pipeline_mode<synchronous>, transform_indices = @transform_4, window_bounds = array<i64: 32, 16>}, {transform_indices = @transform_5, window_bounds = array<i64: 128, 16>}]} {
    %c0 = arith.constant 0 : index
    %c0_0 = arith.constant 0 : index
    %0 = vector.load %arg1[%c0, %c0_0] : memref<128x128xbf16, #tpu.memory_space<vmem>>, vector<128x128xbf16>
    %c0_1 = arith.constant 0 : index
    %c0_2 = arith.constant 0 : index
    %1 = vector.load %arg2[%c0_1, %c0_2] : memref<128x4xbf16, #tpu.memory_space<vmem>>, vector<128x4xbf16>
    %cst = arith.constant dense<0.000000e+00> : vector<128x4xf32>
    %2 = tpu.matmul %0, %1, %cst {dimension_numbers = #tpu.dot_dimension_numbers<[1], [0], [0], [1], [0, 0, 1, 1], [], []>} : vector<128x128xbf16>, vector<128x4xbf16>, vector<128x4xf32> -> vector<128x4xf32>
    %c0_3 = arith.constant 0 : index
    %c0_4 = arith.constant 0 : index
    %3 = vector.load %arg3[%c0_3, %c0_4] : memref<4x32xf32, #tpu.memory_space<vmem>>, vector<4x32xf32>
    %cst_5 = arith.constant dense<0.000000e+00> : vector<128x32xf32>
    %4 = tpu.matmul %2, %3, %cst_5 {dimension_numbers = #tpu.dot_dimension_numbers<[1], [0], [0], [1], [0, 0, 1, 1], [], []>} : vector<128x4xf32>, vector<4x32xf32>, vector<128x32xf32> -> vector<128x32xf32>
    %c0_6 = arith.constant 0 : index
    %c0_7 = arith.constant 0 : index
    %5 = vector.load %arg4[%c0_6, %c0_7] : memref<1x32xf32, #tpu.memory_space<vmem>>, vector<1x32xf32>
    %6 = vector.broadcast %5 : vector<1x32xf32> to vector<128x32xf32>
    %7 = arith.addf %4, %6 : vector<128x32xf32>
    %cst_8 = arith.constant 0.000000e+00 : f32
    %8 = vector.broadcast %cst_8 : f32 to vector<128x32xf32>
    %9 = arith.maximumf %7, %8 : vector<128x32xf32>
    %c0_9 = arith.constant 0 : index
    %c0_10 = arith.constant 0 : index
    %10 = vector.load %arg5[%c0_9, %c0_10] : memref<32x16xf32, #tpu.memory_space<vmem>>, vector<32x16xf32>
    %cst_11 = arith.constant dense<0.000000e+00> : vector<128x16xf32>
    %11 = tpu.matmul %9, %10, %cst_11 {dimension_numbers = #tpu.dot_dimension_numbers<[1], [0], [0], [1], [0, 0, 1, 1], [], []>} : vector<128x32xf32>, vector<32x16xf32>, vector<128x16xf32> -> vector<128x16xf32>
    %12 = arith.truncf %11 : vector<128x16xf32> to vector<128x16xbf16>
    %c0_12 = arith.constant 0 : index
    %c0_13 = arith.constant 0 : index
    %13 = vector.load %arg6[%c0_12, %c0_13] : memref<128x16xbf16, #tpu.memory_space<vmem>>, vector<128x16xbf16>
    tpu.vector_store %arg6[%c0_12, %c0_13], %12 {strides = array<i32>} : memref<128x16xbf16, #tpu.memory_space<vmem>>, vector<128x16xbf16>,
    return
  }
  func.func @transform_0(%arg0: i32) -> (i32, i32) {
    %c0_i32 = arith.constant 0 : i32
    %c0_i32_0 = arith.constant 0 : i32
    return %arg0, %c0_i32 : i32, i32
  }
  func.func @transform_1(%arg0: i32) -> (i32, i32) {
    %c0_i32 = arith.constant 0 : i32
    %c0_i32_0 = arith.constant 0 : i32
    %c0_i32_1 = arith.constant 0 : i32
    return %c0_i32, %c0_i32_0 : i32, i32
  }
  func.func @transform_2(%arg0: i32) -> (i32, i32) {
    %c0_i32 = arith.constant 0 : i32
    %c0_i32_0 = arith.constant 0 : i32
    %c0_i32_1 = arith.constant 0 : i32
    return %c0_i32, %c0_i32_0 : i32, i32
  }
  func.func @transform_3(%arg0: i32) -> (i32, i32) {
    %c0_i32 = arith.constant 0 : i32
    %c0_i32_0 = arith.constant 0 : i32
    %c0_i32_1 = arith.constant 0 : i32
    return %c0_i32, %c0_i32_0 : i32, i32
  }
  func.func @transform_4(%arg0: i32) -> (i32, i32) {
    %c0_i32 = arith.constant 0 : i32
    %c0_i32_0 = arith.constant 0 : i32
    %c0_i32_1 = arith.constant 0 : i32
    return %c0_i32, %c0_i32_0 : i32, i32
  }
  func.func @transform_5(%arg0: i32) -> (i32, i32) {
    %c0_i32 = arith.constant 0 : i32
    %c0_i32_0 = arith.constant 0 : i32
    return %arg0, %c0_i32 : i32, i32
  }
}

</mosaic_0001>

<llo_original>
// kernel: net_forward.3
$region0: #{net_forward.3}
  #allocation0 [shape = 'u32[]', space=smem, size = 0x4, offset = 0x4, fixed_abs, tag = 'smem constant byte address 0x4 - core index']
  #allocation1 [shape = 'u32[72,128]{1,0:T(1,128)}', space=vmem, size = 0x9000, scoped, tag = 'internal scratch']
  %s0 = inlined_call_operand.vmem [shape: bf16[128,128], index: 0, kind: input, shape index: {}]
  %s1 = inlined_call_operand.vmem [shape: bf16[128,16], index: 1, kind: input, shape index: {}]
  %s2 = inlined_call_operand.vmem [shape: f32[1,16], index: 2, kind: input, shape index: {}]
  %s3 = inlined_call_operand.vmem [shape: f32[16,128], index: 3, kind: input, shape index: {}]
  %s4 = inlined_call_operand.vmem [shape: f32[1,128], index: 4, kind: input, shape index: {}]
  %s5 = inlined_call_operand.vmem [shape: f32[128,128], index: 5, kind: output, shape index: {}]
  %s6 = sld [smem:[#allocation0]]
  $region30: #{net_forward.3} parent=0
    _
  %s8 = ssub.s32 1, %s6
  %s9 = scalar_select 0, %s8, %s6
  // Predicated region
  $region2: #{net_forward.3} parent=0 // pred_check
    _
  $region3: #{net_forward.3} parent=0 // pred_check_branch
    %11 = sbr.rel (0) target = $region5
  $region4: #{net_forward.3} parent=0 // pred_region
    _
  $region5: #{net_forward.3} parent=0 // pred_fallthru
    _
  // Predicated region
  $region6: #{net_forward.3} parent=0 // pred_check
    _
  $region7: #{net_forward.3} parent=0 // pred_check_branch
    %13 = sbr.rel (0) target = $region9
  $region8: #{net_forward.3} parent=0 // pred_region
    _
  $region9: #{net_forward.3} parent=0 // pred_fallthru
    _
  // Predicated region
  $region10: #{net_forward.3} parent=0 // pred_check
    _
  $region11: #{net_forward.3} parent=0 // pred_check_branch
    %15 = sbr.rel (0) target = $region13
  $region12: #{net_forward.3} parent=0 // pred_region
    _
  $region13: #{net_forward.3} parent=0 // pred_fallthru
    _
  // Predicated region
  $region14: #{net_forward.3} parent=0 // pred_check
    _
  $region15: #{net_forward.3} parent=0 // pred_check_branch
    %17 = sbr.rel (0) target = $region17
  $region16: #{net_forward.3} parent=0 // pred_region
    _
  $region17: #{net_forward.3} parent=0 // pred_fallthru
    _
  // Predicated region
  $region18: #{net_forward.3} parent=0 // pred_check
    _
  $region19: #{net_forward.3} parent=0 // pred_check_branch
    %19 = sbr.rel (0) target = $region21
  $region20: #{net_forward.3} parent=0 // pred_region
    _
  $region21: #{net_forward.3} parent=0 // pred_fallthru
    _
  %v20 = vld [vmem:[%s0] sm:$0xf]
  %v21 = vld [vmem:[%s0 + $0x4] sm:$0xf]
  %v22 = vld [vmem:[%s0 + $0x8] sm:$0xf]
  %v23 = vld [vmem:[%s0 + $0xc] sm:$0xf]
  %v24 = vld [vmem:[%s0 + $0x10] sm:$0xf]
  %v25 = vld [vmem:[%s0 + $0x14] sm:$0xf]
  %v26 = vld [vmem:[%s0 + $0x18] sm:$0xf]
  %v27 = vld [vmem:[%s0 + $0x1c] sm:$0xf]
  %v28 = vld [vmem:[%s0 + $0x20] sm:$0xf]
  %v29 = vld [vmem:[%s0 + $0x24] sm:$0xf]
  %v30 = vld [vmem:[%s0 + $0x28] sm:$0xf]
  %v31 = vld [vmem:[%s0 + $0x2c] sm:$0xf]
  %v32 = vld [vmem:[%s0 + $0x30] sm:$0xf]
  %v33 = vld [vmem:[%s0 + $0x34] sm:$0xf]
  %v34 = vld [vmem:[%s0 + $0x38] sm:$0xf]
  %v35 = vld [vmem:[%s0 + $0x3c] sm:$0xf]
  %v36 = vld [vmem:[%s1] sm:$0xf]
  %v37 = vld [vmem:[%s1 + $0x4] sm:$0xf]
  %v38 = vld [vmem:[%s1 + $0x8] sm:$0xf]
  %v39 = vld [vmem:[%s1 + $0xc] sm:$0xf]
  %v40 = vld [vmem:[%s1 + $0x10] sm:$0xf]
  %v41 = vld [vmem:[%s1 + $0x14] sm:$0xf]
  %v42 = vld [vmem:[%s1 + $0x18] sm:$0xf]
  %v43 = vld [vmem:[%s1 + $0x1c] sm:$0xf]
  %v44 = vld [vmem:[%s1 + $0x20] sm:$0xf]
  %v45 = vld [vmem:[%s1 + $0x24] sm:$0xf]
  %v46 = vld [vmem:[%s1 + $0x28] sm:$0xf]
  %v47 = vld [vmem:[%s1 + $0x2c] sm:$0xf]
  %v48 = vld [vmem:[%s1 + $0x30] sm:$0xf]
  %v49 = vld [vmem:[%s1 + $0x34] sm:$0xf]
  %v50 = vld [vmem:[%s1 + $0x38] sm:$0xf]
  %v51 = vld [vmem:[%s1 + $0x3c] sm:$0xf]
  %v52 = vld [vmem:[%s2] sm:$0x1]
  %v54 = vperm.slane %v52, 0
  %v72 = vunpack.c.l.b16 %v20
  %v73 = vunpack.c.l.b16 %v21
  %v74 = vunpack.c.l.b16 %v22
  %v75 = vunpack.c.l.b16 %v23
  %v76 = vunpack.c.l.b16 %v24
  %v77 = vunpack.c.l.b16 %v25
  %v78 = vunpack.c.l.b16 %v26
  %v79 = vunpack.c.l.b16 %v27
  %v80 = vunpack.c.l.b16 %v28
  %v81 = vunpack.c.l.b16 %v29
  %v82 = vunpack.c.l.b16 %v30
  %v83 = vunpack.c.l.b16 %v31
  %v84 = vunpack.c.l.b16 %v32
  %v85 = vunpack.c.l.b16 %v33
  %v86 = vunpack.c.l.b16 %v34
  %v87 = vunpack.c.l.b16 %v35
  %v88 = vpack.c.b16 %v73, %v72
  %v89 = vpack.c.b16 %v75, %v74
  %v90 = vpack.c.b16 %v77, %v76
  %v91 = vpack.c.b16 %v79, %v78
  %v92 = vpack.c.b16 %v81, %v80
  %v93 = vpack.c.b16 %v83, %v82
  %v94 = vpack.c.b16 %v85, %v84
  %v95 = vpack.c.b16 %v87, %v86
  %v120 = vunpack.c.l.b16 %v36
  %v121 = vunpack.c.l.b16 %v37
  %v122 = vunpack.c.l.b16 %v38
  %v123 = vunpack.c.l.b16 %v39
  %v124 = vunpack.c.l.b16 %v40
  %v125 = vunpack.c.l.b16 %v41
  %v126 = vunpack.c.l.b16 %v42
  %v127 = vunpack.c.l.b16 %v43
  %v128 = vunpack.c.l.b16 %v44
  %v129 = vunpack.c.l.b16 %v45
  %v130 = vunpack.c.l.b16 %v46
  %v131 = vunpack.c.l.b16 %v47
  %v132 = vunpack.c.l.b16 %v48
  %v133 = vunpack.c.l.b16 %v49
  %v134 = vunpack.c.l.b16 %v50
  %v135 = vunpack.c.l.b16 %v51
  %v136 = vpack.c.b16 %v121, %v120
  %v137 = vpack.c.b16 %v123, %v122
  %v138 = vpack.c.b16 %v125, %v124
  %v139 = vpack.c.b16 %v127, %v126
  %v140 = vpack.c.b16 %v129, %v128
  %v141 = vpack.c.b16 %v131, %v130
  %v142 = vpack.c.b16 %v133, %v132
  %v143 = vpack.c.b16 %v135, %v134
  %152 = vmatpush.bf16.msra.mxu0 %v143
  %153 = vmatpush.bf16.msra.mxu0 %v142
  %154 = vmatpush.bf16.msra.mxu0 %v141
  %155 = vmatpush.bf16.msra.mxu0 %v140
  %156 = vmatpush.bf16.msra.mxu0 %v139
  %157 = vmatpush.bf16.msra.mxu0 %v138
  %158 = vmatpush.bf16.msra.mxu0 %v137
  %159 = vmatpush.bf16.msra.mxu0 %v136
  %160 = vmatmul.bf16.gmra.mxu0 %v88
  %v161 = vpop.f32.mrf.mxu0
  %v162 = vadd.f32 %v54, %v161
  %v163 = vpop.f32.mrf.mxu0
  %v164 = vadd.f32 %v54, %v163
  %165 = vmatmul.bf16.gmra.mxu0 %v89
  %v166 = vpop.f32.mrf.mxu0
  %v167 = vadd.f32 %v54, %v166
  %v168 = vpop.f32.mrf.mxu0
  %v169 = vadd.f32 %v54, %v168
  %170 = vmatmul.bf16.gmra.mxu0 %v90
  %v171 = vpop.f32.mrf.mxu0
  %v172 = vadd.f32 %v54, %v171
  %v173 = vpop.f32.mrf.mxu0
  %v174 = vadd.f32 %v54, %v173
  %175 = vmatmul.bf16.gmra.mxu0 %v91
  %v176 = vpop.f32.mrf.mxu0
  %v177 = vadd.f32 %v54, %v176
  %v178 = vpop.f32.mrf.mxu0
  %v179 = vadd.f32 %v54, %v178
  %180 = vmatmul.bf16.gmra.mxu0 %v92
  %v181 = vpop.f32.mrf.mxu0
  %v182 = vadd.f32 %v54, %v181
  %v183 = vpop.f32.mrf.mxu0
  %v184 = vadd.f32 %v54, %v183
  %185 = vmatmul.bf16.gmra.mxu0 %v93
  %v186 = vpop.f32.mrf.mxu0
  %v187 = vadd.f32 %v54, %v186
  %v188 = vpop.f32.mrf.mxu0
  %v189 = vadd.f32 %v54, %v188
  %190 = vmatmul.bf16.gmra.mxu0 %v94
  %v191 = vpop.f32.mrf.mxu0
  %v192 = vadd.f32 %v54, %v191
  %v193 = vpop.f32.mrf.mxu0
  %v194 = vadd.f32 %v54, %v193
  %195 = vmatmul.bf16.gmra.mxu0 %v95
  %v196 = vpop.f32.mrf.mxu0
  %v197 = vadd.f32 %v54, %v196
  %v198 = vpop.f32.mrf.mxu0
  %v199 = vadd.f32 %v54, %v198
  %200 = vdwg.mxu0
  %v201 = vld [vmem:[%s3] sm:$0xff]
  %v202 = vld [vmem:[%s3 + $0x8] sm:$0xff]
  %v203 = vld [vmem:[%s4] sm:$0x1]
  %v205 = vperm.slane %v203, 0
  %vm207 = vcmask 130048
  %v209 = vsel %vm207, %v162, 0
  %v212 = vsel %vm207, %v164, 0
  %v215 = vsel %vm207, %v167, 0
  %v218 = vsel %vm207, %v169, 0
  %v221 = vsel %vm207, %v172, 0
  %v224 = vsel %vm207, %v174, 0
  %v227 = vsel %vm207, %v177, 0
  %v230 = vsel %vm207, %v179, 0
  %v233 = vsel %vm207, %v182, 0
  %v236 = vsel %vm207, %v184, 0
  %v239 = vsel %vm207, %v187, 0
  %v242 = vsel %vm207, %v189, 0
  %v245 = vsel %vm207, %v192, 0
  %v248 = vsel %vm207, %v194, 0
  %v251 = vsel %vm207, %v197, 0
  %v254 = vsel %vm207, %v199, 0
  %256 = vmatpush.msra.mxu0 0.0
  %257 = vmatpush.msra.mxu0 0.0
  %258 = vmatpush.msra.mxu0 0.0
  %259 = vmatpush.msra.mxu0 0.0
  %260 = vmatpush.msra.mxu0 0.0
  %261 = vmatpush.msra.mxu0 0.0
  %262 = vmatpush.msra.mxu0 0.0
  %263 = vmatpush.msra.mxu0 0.0
  %264 = vmatpush.msra.mxu0 0.0
  %265 = vmatpush.msra.mxu0 0.0
  %266 = vmatpush.msra.mxu0 0.0
  %267 = vmatpush.msra.mxu0 0.0
  %268 = vmatpush.msra.mxu0 0.0
  %269 = vmatpush.msra.mxu0 0.0
  %270 = vmatpush.msra.mxu0 %v202
  %271 = vmatpush.msra.mxu0 %v201
  %272 = vmatmul.f32.gmra.mxu0 %v209
  %v273 = vpop.f32.mrf.mxu0
  %v274 = vadd.f32 %v205, %v273
  %275 = vmatmul.f32.gmra.mxu0 %v212
  %v276 = vpop.f32.mrf.mxu0
  %v277 = vadd.f32 %v205, %v276
  %278 = vmatmul.f32.gmra.mxu0 %v215
  %v279 = vpop.f32.mrf.mxu0
  %v280 = vadd.f32 %v205, %v279
  %281 = vmatmul.f32.gmra.mxu0 %v218
  %v282 = vpop.f32.mrf.mxu0
  %v283 = vadd.f32 %v205, %v282
  %284 = vmatmul.f32.gmra.mxu0 %v221
  %v285 = vpop.f32.mrf.mxu0
  %v286 = vadd.f32 %v205, %v285
  %287 = vmatmul.f32.gmra.mxu0 %v224
  %v288 = vpop.f32.mrf.mxu0
  %v289 = vadd.f32 %v205, %v288
  %290 = vmatmul.f32.gmra.mxu0 %v227
  %v291 = vpop.f32.mrf.mxu0
  %v292 = vadd.f32 %v205, %v291
  %293 = vmatmul.f32.gmra.mxu0 %v230
  %v294 = vpop.f32.mrf.mxu0
  %v295 = vadd.f32 %v205, %v294
  %296 = vmatmul.f32.gmra.mxu0 %v233
  %v297 = vpop.f32.mrf.mxu0
  %v298 = vadd.f32 %v205, %v297
  %299 = vmatmul.f32.gmra.mxu0 %v236
  %v300 = vpop.f32.mrf.mxu0
  %v301 = vadd.f32 %v205, %v300
  %302 = vmatmul.f32.gmra.mxu0 %v239
  %v303 = vpop.f32.mrf.mxu0
  %v304 = vadd.f32 %v205, %v303
  %305 = vmatmul.f32.gmra.mxu0 %v242
  %v306 = vpop.f32.mrf.mxu0
  %v307 = vadd.f32 %v205, %v306
  %308 = vmatmul.f32.gmra.mxu0 %v245
  %v309 = vpop.f32.mrf.mxu0
  %v310 = vadd.f32 %v205, %v309
  %311 = vmatmul.f32.gmra.mxu0 %v248
  %v312 = vpop.f32.mrf.mxu0
  %v313 = vadd.f32 %v205, %v312
  %314 = vmatmul.f32.gmra.mxu0 %v251
  %v315 = vpop.f32.mrf.mxu0
  %v316 = vadd.f32 %v205, %v315
  %317 = vmatmul.f32.gmra.mxu0 %v254
  %v318 = vpop.f32.mrf.mxu0
  %v319 = vadd.f32 %v205, %v318
  %320 = vdwg.mxu0
  %v321 = vxor.u32 %v274, 2147483648
  %v322 = vxor.u32 %v277, 2147483648
  %v323 = vxor.u32 %v280, 2147483648
  %v324 = vxor.u32 %v283, 2147483648
  %v325 = vxor.u32 %v286, 2147483648
  %v326 = vxor.u32 %v289, 2147483648
  %v327 = vxor.u32 %v292, 2147483648
  %v328 = vxor.u32 %v295, 2147483648
  %v329 = vxor.u32 %v298, 2147483648
  %v330 = vxor.u32 %v301, 2147483648
  %v331 = vxor.u32 %v304, 2147483648
  %v332 = vxor.u32 %v307, 2147483648
  %v333 = vxor.u32 %v310, 2147483648
  %v334 = vxor.u32 %v313, 2147483648
  %v335 = vxor.u32 %v316, 2147483648
  %v336 = vxor.u32 %v319, 2147483648
  %v337 = vmul.f32 %v321, 1.442695
  %v338 = vpow.pop %v337
  %v339 = vmul.f32 %v322, 1.442695
  %v340 = vpow.pop %v339
  %v341 = vmul.f32 %v323, 1.442695
  %v342 = vpow.pop %v341
  %v343 = vmul.f32 %v324, 1.442695
  %v344 = vpow.pop %v343
  %v345 = vmul.f32 %v325, 1.442695
  %v346 = vpow.pop %v345
  %v347 = vmul.f32 %v326, 1.442695
  %v348 = vpow.pop %v347
  %v349 = vmul.f32 %v327, 1.442695
  %v350 = vpow.pop %v349
  %v351 = vmul.f32 %v328, 1.442695
  %v352 = vpow.pop %v351
  %v353 = vmul.f32 %v329, 1.442695
  %v354 = vpow.pop %v353
  %v355 = vmul.f32 %v330, 1.442695
  %v356 = vpow.pop %v355
  %v357 = vmul.f32 %v331, 1.442695
  %v358 = vpow.pop %v357
  %v359 = vmul.f32 %v332, 1.442695
  %v360 = vpow.pop %v359
  %v361 = vmul.f32 %v333, 1.442695
  %v362 = vpow.pop %v361
  %v363 = vmul.f32 %v334, 1.442695
  %v364 = vpow.pop %v363
  %v365 = vmul.f32 %v335, 1.442695
  %v366 = vpow.pop %v365
  %v367 = vmul.f32 %v336, 1.442695
  %v368 = vpow.pop %v367
  %v369 = vadd.f32 %v338, 1.0
  %v370 = vadd.f32 %v340, 1.0
  %v371 = vadd.f32 %v342, 1.0
  %v372 = vadd.f32 %v344, 1.0
  %v373 = vadd.f32 %v346, 1.0
  %v374 = vadd.f32 %v348, 1.0
  %v375 = vadd.f32 %v350, 1.0
  %v376 = vadd.f32 %v352, 1.0
  %v377 = vadd.f32 %v354, 1.0
  %v378 = vadd.f32 %v356, 1.0
  %v379 = vadd.f32 %v358, 1.0
  %v380 = vadd.f32 %v360, 1.0
  %v381 = vadd.f32 %v362, 1.0
  %v382 = vadd.f32 %v364, 1.0
  %v383 = vadd.f32 %v366, 1.0
  %v384 = vadd.f32 %v368, 1.0
  %v385 = vrcp.pop %v369
  %v386 = vmul.f32 %v369, %v385
  %v387 = vsub.f32 1.0, %v386
  %v388 = vmul.f32 %v385, %v387
  %v389 = vadd.f32 %v385, %v388
  %vm390 = vweird.f32 %v369
  %vm391 = vweird.f32 %v385
  %vm392 = vmor %vm390, %vm391
  %v393 = vsel %vm392, %v385, %v389
  %v394 = vand.u32 2147483647, %v369
  %vm395 = vcmp.eq.f32.partialorder %v394, 8.507059e+37
  %v396 = vand.u32 %v369, 2147483648
  %v397 = vor.u32 1.1754944e-38, %v396
  %v398 = vsel %vm395, %v397, %v393
  %v399 = vmul.f32 1.0, %v398
  %v400 = vrcp.pop %v370
  %v401 = vmul.f32 %v370, %v400
  %v402 = vsub.f32 1.0, %v401
  %v403 = vmul.f32 %v400, %v402
  %v404 = vadd.f32 %v400, %v403
  %vm405 = vweird.f32 %v370
  %vm406 = vweird.f32 %v400
  %vm407 = vmor %vm405, %vm406
  %v408 = vsel %vm407, %v400, %v404
  %v409 = vand.u32 2147483647, %v370
  %vm410 = vcmp.eq.f32.partialorder %v409, 8.507059e+37
  %v411 = vand.u32 %v370, 2147483648
  %v412 = vor.u32 1.1754944e-38, %v411
  %v413 = vsel %vm410, %v412, %v408
  %v414 = vmul.f32 1.0, %v413
  %v415 = vrcp.pop %v371
  %v416 = vmul.f32 %v371, %v415
  %v417 = vsub.f32 1.0, %v416
  %v418 = vmul.f32 %v415, %v417
  %v419 = vadd.f32 %v415, %v418
  %vm420 = vweird.f32 %v371
  %vm421 = vweird.f32 %v415
  %vm422 = vmor %vm420, %vm421
  %v423 = vsel %vm422, %v415, %v419
  %v424 = vand.u32 2147483647, %v371
  %vm425 = vcmp.eq.f32.partialorder %v424, 8.507059e+37
  %v426 = vand.u32 %v371, 2147483648
  %v427 = vor.u32 1.1754944e-38, %v426
  %v428 = vsel %vm425, %v427, %v423
  %v429 = vmul.f32 1.0, %v428
  %v430 = vrcp.pop %v372
  %v431 = vmul.f32 %v372, %v430
  %v432 = vsub.f32 1.0, %v431
  %v433 = vmul.f32 %v430, %v432
  %v434 = vadd.f32 %v430, %v433
  %vm435 = vweird.f32 %v372
  %vm436 = vweird.f32 %v430
  %vm437 = vmor %vm435, %vm436
  %v438 = vsel %vm437, %v430, %v434
  %v439 = vand.u32 2147483647, %v372
  %vm440 = vcmp.eq.f32.partialorder %v439, 8.507059e+37
  %v441 = vand.u32 %v372, 2147483648
  %v442 = vor.u32 1.1754944e-38, %v441
  %v443 = vsel %vm440, %v442, %v438
  %v444 = vmul.f32 1.0, %v443
  %v445 = vrcp.pop %v373
  %v446 = vmul.f32 %v373, %v445
  %v447 = vsub.f32 1.0, %v446
  %v448 = vmul.f32 %v445, %v447
  %v449 = vadd.f32 %v445, %v448
  %vm450 = vweird.f32 %v373
  %vm451 = vweird.f32 %v445
  %vm452 = vmor %vm450, %vm451
  %v453 = vsel %vm452, %v445, %v449
  %v454 = vand.u32 2147483647, %v373
  %vm455 = vcmp.eq.f32.partialorder %v454, 8.507059e+37
  %v456 = vand.u32 %v373, 2147483648
  %v457 = vor.u32 1.1754944e-38, %v456
  %v458 = vsel %vm455, %v457, %v453
  %v459 = vmul.f32 1.0, %v458
  %v460 = vrcp.pop %v374
  %v461 = vmul.f32 %v374, %v460
  %v462 = vsub.f32 1.0, %v461
  %v463 = vmul.f32 %v460, %v462
  %v464 = vadd.f32 %v460, %v463
  %vm465 = vweird.f32 %v374
  %vm466 = vweird.f32 %v460
  %vm467 = vmor %vm465, %vm466
  %v468 = vsel %vm467, %v460, %v464
  %v469 = vand.u32 2147483647, %v374
  %vm470 = vcmp.eq.f32.partialorder %v469, 8.507059e+37
  %v471 = vand.u32 %v374, 2147483648
  %v472 = vor.u32 1.1754944e-38, %v471
  %v473 = vsel %vm470, %v472, %v468
  %v474 = vmul.f32 1.0, %v473
  %v475 = vrcp.pop %v375
  %v476 = vmul.f32 %v375, %v475
  %v477 = vsub.f32 1.0, %v476
  %v478 = vmul.f32 %v475, %v477
  %v479 = vadd.f32 %v475, %v478
  %vm480 = vweird.f32 %v375
  %vm481 = vweird.f32 %v475
  %vm482 = vmor %vm480, %vm481
  %v483 = vsel %vm482, %v475, %v479
  %v484 = vand.u32 2147483647, %v375
  %vm485 = vcmp.eq.f32.partialorder %v484, 8.507059e+37
  %v486 = vand.u32 %v375, 2147483648
  %v487 = vor.u32 1.1754944e-38, %v486
  %v488 = vsel %vm485, %v487, %v483
  %v489 = vmul.f32 1.0, %v488
  %v490 = vrcp.pop %v376
  %v491 = vmul.f32 %v376, %v490
  %v492 = vsub.f32 1.0, %v491
  %v493 = vmul.f32 %v490, %v492
  %v494 = vadd.f32 %v490, %v493
  %vm495 = vweird.f32 %v376
  %vm496 = vweird.f32 %v490
  %vm497 = vmor %vm495, %vm496
  %v498 = vsel %vm497, %v490, %v494
  %v499 = vand.u32 2147483647, %v376
  %vm500 = vcmp.eq.f32.partialorder %v499, 8.507059e+37
  %v501 = vand.u32 %v376, 2147483648
  %v502 = vor.u32 1.1754944e-38, %v501
  %v503 = vsel %vm500, %v502, %v498
  %v504 = vmul.f32 1.0, %v503
  %v505 = vrcp.pop %v377
  %v506 = vmul.f32 %v377, %v505
  %v507 = vsub.f32 1.0, %v506
  %v508 = vmul.f32 %v505, %v507
  %v509 = vadd.f32 %v505, %v508
  %vm510 = vweird.f32 %v377
  %vm511 = vweird.f32 %v505
  %vm512 = vmor %vm510, %vm511
  %v513 = vsel %vm512, %v505, %v509
  %v514 = vand.u32 2147483647, %v377
  %vm515 = vcmp.eq.f32.partialorder %v514, 8.507059e+37
  %v516 = vand.u32 %v377, 2147483648
  %v517 = vor.u32 1.1754944e-38, %v516
  %v518 = vsel %vm515, %v517, %v513
  %v519 = vmul.f32 1.0, %v518
  %v520 = vrcp.pop %v378
  %v521 = vmul.f32 %v378, %v520
  %v522 = vsub.f32 1.0, %v521
  %v523 = vmul.f32 %v520, %v522
  %v524 = vadd.f32 %v520, %v523
  %vm525 = vweird.f32 %v378
  %vm526 = vweird.f32 %v520
  %vm527 = vmor %vm525, %vm526
  %v528 = vsel %vm527, %v520, %v524
  %v529 = vand.u32 2147483647, %v378
  %vm530 = vcmp.eq.f32.partialorder %v529, 8.507059e+37
  %v531 = vand.u32 %v378, 2147483648
  %v532 = vor.u32 1.1754944e-38, %v531
  %v533 = vsel %vm530, %v532, %v528
  %v534 = vmul.f32 1.0, %v533
  %v535 = vrcp.pop %v379
  %v536 = vmul.f32 %v379, %v535
  %v537 = vsub.f32 1.0, %v536
  %v538 = vmul.f32 %v535, %v537
  %v539 = vadd.f32 %v535, %v538
  %vm540 = vweird.f32 %v379
  %vm541 = vweird.f32 %v535
  %vm542 = vmor %vm540, %vm541
  %v543 = vsel %vm542, %v535, %v539
  %v544 = vand.u32 2147483647, %v379
  %vm545 = vcmp.eq.f32.partialorder %v544, 8.507059e+37
  %v546 = vand.u32 %v379, 2147483648
  %v547 = vor.u32 1.1754944e-38, %v546
  %v548 = vsel %vm545, %v547, %v543
  %v549 = vmul.f32 1.0, %v548
  %v550 = vrcp.pop %v380
  %v551 = vmul.f32 %v380, %v550
  %v552 = vsub.f32 1.0, %v551
  %v553 = vmul.f32 %v550, %v552
  %v554 = vadd.f32 %v550, %v553
  %vm555 = vweird.f32 %v380
  %vm556 = vweird.f32 %v550
  %vm557 = vmor %vm555, %vm556
  %v558 = vsel %vm557, %v550, %v554
  %v559 = vand.u32 2147483647, %v380
  %vm560 = vcmp.eq.f32.partialorder %v559, 8.507059e+37
  %v561 = vand.u32 %v380, 2147483648
  %v562 = vor.u32 1.1754944e-38, %v561
  %v563 = vsel %vm560, %v562, %v558
  %v564 = vmul.f32 1.0, %v563
  %v565 = vrcp.pop %v381
  %v566 = vmul.f32 %v381, %v565
  %v567 = vsub.f32 1.0, %v566
  %v568 = vmul.f32 %v565, %v567
  %v569 = vadd.f32 %v565, %v568
  %vm570 = vweird.f32 %v381
  %vm571 = vweird.f32 %v565
  %vm572 = vmor %vm570, %vm571
  %v573 = vsel %vm572, %v565, %v569
  %v574 = vand.u32 2147483647, %v381
  %vm575 = vcmp.eq.f32.partialorder %v574, 8.507059e+37
  %v576 = vand.u32 %v381, 2147483648
  %v577 = vor.u32 1.1754944e-38, %v576
  %v578 = vsel %vm575, %v577, %v573
  %v579 = vmul.f32 1.0, %v578
  %v580 = vrcp.pop %v382
  %v581 = vmul.f32 %v382, %v580
  %v582 = vsub.f32 1.0, %v581
  %v583 = vmul.f32 %v580, %v582
  %v584 = vadd.f32 %v580, %v583
  %vm585 = vweird.f32 %v382
  %vm586 = vweird.f32 %v580
  %vm587 = vmor %vm585, %vm586
  %v588 = vsel %vm587, %v580, %v584
  %v589 = vand.u32 2147483647, %v382
  %vm590 = vcmp.eq.f32.partialorder %v589, 8.507059e+37
  %v591 = vand.u32 %v382, 2147483648
  %v592 = vor.u32 1.1754944e-38, %v591
  %v593 = vsel %vm590, %v592, %v588
  %v594 = vmul.f32 1.0, %v593
  %v595 = vrcp.pop %v383
  %v596 = vmul.f32 %v383, %v595
  %v597 = vsub.f32 1.0, %v596
  %v598 = vmul.f32 %v595, %v597
  %v599 = vadd.f32 %v595, %v598
  %vm600 = vweird.f32 %v383
  %vm601 = vweird.f32 %v595
  %vm602 = vmor %vm600, %vm601
  %v603 = vsel %vm602, %v595, %v599
  %v604 = vand.u32 2147483647, %v383
  %vm605 = vcmp.eq.f32.partialorder %v604, 8.507059e+37
  %v606 = vand.u32 %v383, 2147483648
  %v607 = vor.u32 1.1754944e-38, %v606
  %v608 = vsel %vm605, %v607, %v603
  %v609 = vmul.f32 1.0, %v608
  %v610 = vrcp.pop %v384
  %v611 = vmul.f32 %v384, %v610
  %v612 = vsub.f32 1.0, %v611
  %v613 = vmul.f32 %v610, %v612
  %v614 = vadd.f32 %v610, %v613
  %vm615 = vweird.f32 %v384
  %vm616 = vweird.f32 %v610
  %vm617 = vmor %vm615, %vm616
  %v618 = vsel %vm617, %v610, %v614
  %v619 = vand.u32 2147483647, %v384
  %vm620 = vcmp.eq.f32.partialorder %v619, 8.507059e+37
  %v621 = vand.u32 %v384, 2147483648
  %v622 = vor.u32 1.1754944e-38, %v621
  %v623 = vsel %vm620, %v622, %v618
  %v624 = vmul.f32 1.0, %v623
  %625 = vst [vmem:[%s5] sm:$0xff] %v399
  %626 = vst [vmem:[%s5 + $0x8] sm:$0xff] %v414
  %627 = vst [vmem:[%s5 + $0x10] sm:$0xff] %v429
  %628 = vst [vmem:[%s5 + $0x18] sm:$0xff] %v444
  %629 = vst [vmem:[%s5 + $0x20] sm:$0xff] %v459
  %630 = vst [vmem:[%s5 + $0x28] sm:$0xff] %v474
  %631 = vst [vmem:[%s5 + $0x30] sm:$0xff] %v489
  %632 = vst [vmem:[%s5 + $0x38] sm:$0xff] %v504
  %633 = vst [vmem:[%s5 + $0x40] sm:$0xff] %v519
  %634 = vst [vmem:[%s5 + $0x48] sm:$0xff] %v534
  %635 = vst [vmem:[%s5 + $0x50] sm:$0xff] %v549
  %636 = vst [vmem:[%s5 + $0x58] sm:$0xff] %v564
  %637 = vst [vmem:[%s5 + $0x60] sm:$0xff] %v579
  %638 = vst [vmem:[%s5 + $0x68] sm:$0xff] %v594
  %639 = vst [vmem:[%s5 + $0x70] sm:$0xff] %v609
  %640 = vst [vmem:[%s5 + $0x78] sm:$0xff] %v624
  // Predicated region
  $region22: #{net_forward.3} parent=0 // pred_check
    _
  $region23: #{net_forward.3} parent=0 // pred_check_branch
    %642 = sbr.rel (0) target = $region25
  $region24: #{net_forward.3} parent=0 // pred_region
    _
  $region25: #{net_forward.3} parent=0 // pred_fallthru
    _
  // Predicated region
  $region26: #{net_forward.3} parent=0 // pred_check
    _
  $region27: #{net_forward.3} parent=0 // pred_check_branch
    %644 = sbr.rel (0) target = $region29
  $region28: #{net_forward.3} parent=0 // pred_region
    _
  $region29: #{net_forward.3} parent=0 // pred_fallthru
    _

// kernel: net_forward.2
$region0: #{net_forward.2}
  #allocation0 [shape = 'u32[]', space=smem, size = 0x4, offset = 0x4, fixed_abs, tag = 'smem constant byte address 0x4 - core index']
  #allocation1 [shape = 'u32[72,128]{1,0:T(1,128)}', space=vmem, size = 0x9000, scoped, tag = 'internal scratch']
  %s0 = inlined_call_operand.vmem [shape: bf16[128,128], index: 0, kind: input, shape index: {}]
  %s1 = inlined_call_operand.vmem [shape: bf16[128,4], index: 1, kind: input, shape index: {}]
  %s2 = inlined_call_operand.vmem [shape: f32[4,32], index: 2, kind: input, shape index: {}]
  %s3 = inlined_call_operand.vmem [shape: f32[1,32], index: 3, kind: input, shape index: {}]
  %s4 = inlined_call_operand.vmem [shape: f32[32,16], index: 4, kind: input, shape index: {}]
  %s5 = inlined_call_operand.vmem [shape: bf16[128,16], index: 5, kind: output, shape index: {}]
  %s6 = sld [smem:[#allocation0]]
  $region30: #{net_forward.2} parent=0
    _
  %s8 = ssub.s32 1, %s6
  %s9 = scalar_select 0, %s8, %s6
  // Predicated region
  $region2: #{net_forward.2} parent=0 // pred_check
    _
  $region3: #{net_forward.2} parent=0 // pred_check_branch
    %11 = sbr.rel (0) target = $region5
  $region4: #{net_forward.2} parent=0 // pred_region
    _
  $region5: #{net_forward.2} parent=0 // pred_fallthru
    _
  // Predicated region
  $region6: #{net_forward.2} parent=0 // pred_check
    _
  $region7: #{net_forward.2} parent=0 // pred_check_branch
    %13 = sbr.rel (0) target = $region9
  $region8: #{net_forward.2} parent=0 // pred_region
    _
  $region9: #{net_forward.2} parent=0 // pred_fallthru
    _
  // Predicated region
  $region10: #{net_forward.2} parent=0 // pred_check
    _
  $region11: #{net_forward.2} parent=0 // pred_check_branch
    %15 = sbr.rel (0) target = $region13
  $region12: #{net_forward.2} parent=0 // pred_region
    _
  $region13: #{net_forward.2} parent=0 // pred_fallthru
    _
  // Predicated region
  $region14: #{net_forward.2} parent=0 // pred_check
    _
  $region15: #{net_forward.2} parent=0 // pred_check_branch
    %17 = sbr.rel (0) target = $region17
  $region16: #{net_forward.2} parent=0 // pred_region
    _
  $region17: #{net_forward.2} parent=0 // pred_fallthru
    _
  // Predicated region
  $region18: #{net_forward.2} parent=0 // pred_check
    _
  $region19: #{net_forward.2} parent=0 // pred_check_branch
    %19 = sbr.rel (0) target = $region21
  $region20: #{net_forward.2} parent=0 // pred_region
    _
  $region21: #{net_forward.2} parent=0 // pred_fallthru
    _
  %v20 = vld [vmem:[%s0] sm:$0xf]
  %v21 = vld [vmem:[%s0 + $0x4] sm:$0xf]
  %v22 = vld [vmem:[%s0 + $0x8] sm:$0xf]
  %v23 = vld [vmem:[%s0 + $0xc] sm:$0xf]
  %v24 = vld [vmem:[%s0 + $0x10] sm:$0xf]
  %v25 = vld [vmem:[%s0 + $0x14] sm:$0xf]
  %v26 = vld [vmem:[%s0 + $0x18] sm:$0xf]
  %v27 = vld [vmem:[%s0 + $0x1c] sm:$0xf]
  %v28 = vld [vmem:[%s0 + $0x20] sm:$0xf]
  %v29 = vld [vmem:[%s0 + $0x24] sm:$0xf]
  %v30 = vld [vmem:[%s0 + $0x28] sm:$0xf]
  %v31 = vld [vmem:[%s0 + $0x2c] sm:$0xf]
  %v32 = vld [vmem:[%s0 + $0x30] sm:$0xf]
  %v33 = vld [vmem:[%s0 + $0x34] sm:$0xf]
  %v34 = vld [vmem:[%s0 + $0x38] sm:$0xf]
  %v35 = vld [vmem:[%s0 + $0x3c] sm:$0xf]
  %v36 = vld [vmem:[%s1] sm:$0xf]
  %v37 = vld [vmem:[%s1 + $0x4] sm:$0xf]
  %v38 = vld [vmem:[%s1 + $0x8] sm:$0xf]
  %v39 = vld [vmem:[%s1 + $0xc] sm:$0xf]
  %v40 = vld [vmem:[%s1 + $0x10] sm:$0xf]
  %v41 = vld [vmem:[%s1 + $0x14] sm:$0xf]
  %v42 = vld [vmem:[%s1 + $0x18] sm:$0xf]
  %v43 = vld [vmem:[%s1 + $0x1c] sm:$0xf]
  %v44 = vld [vmem:[%s1 + $0x20] sm:$0xf]
  %v45 = vld [vmem:[%s1 + $0x24] sm:$0xf]
  %v46 = vld [vmem:[%s1 + $0x28] sm:$0xf]
  %v47 = vld [vmem:[%s1 + $0x2c] sm:$0xf]
  %v48 = vld [vmem:[%s1 + $0x30] sm:$0xf]
  %v49 = vld [vmem:[%s1 + $0x34] sm:$0xf]
  %v50 = vld [vmem:[%s1 + $0x38] sm:$0xf]
  %v51 = vld [vmem:[%s1 + $0x3c] sm:$0xf]
  %v68 = vunpack.c.l.b16 %v20
  %v69 = vunpack.c.l.b16 %v21
  %v70 = vunpack.c.l.b16 %v22
  %v71 = vunpack.c.l.b16 %v23
  %v72 = vunpack.c.l.b16 %v24
  %v73 = vunpack.c.l.b16 %v25
  %v74 = vunpack.c.l.b16 %v26
  %v75 = vunpack.c.l.b16 %v27
  %v76 = vunpack.c.l.b16 %v28
  %v77 = vunpack.c.l.b16 %v29
  %v78 = vunpack.c.l.b16 %v30
  %v79 = vunpack.c.l.b16 %v31
  %v80 = vunpack.c.l.b16 %v32
  %v81 = vunpack.c.l.b16 %v33
  %v82 = vunpack.c.l.b16 %v34
  %v83 = vunpack.c.l.b16 %v35
  %v84 = vpack.c.b16 %v69, %v68
  %v85 = vpack.c.b16 %v71, %v70
  %v86 = vpack.c.b16 %v73, %v72
  %v87 = vpack.c.b16 %v75, %v74
  %v88 = vpack.c.b16 %v77, %v76
  %v89 = vpack.c.b16 %v79, %v78
  %v90 = vpack.c.b16 %v81, %v80
  %v91 = vpack.c.b16 %v83, %v82
  %v116 = vunpack.c.l.b16 %v36
  %v117 = vunpack.c.l.b16 %v37
  %v118 = vunpack.c.l.b16 %v38
  %v119 = vunpack.c.l.b16 %v39
  %v120 = vunpack.c.l.b16 %v40
  %v121 = vunpack.c.l.b16 %v41
  %v122 = vunpack.c.l.b16 %v42
  %v123 = vunpack.c.l.b16 %v43
  %v124 = vunpack.c.l.b16 %v44
  %v125 = vunpack.c.l.b16 %v45
  %v126 = vunpack.c.l.b16 %v46
  %v127 = vunpack.c.l.b16 %v47
  %v128 = vunpack.c.l.b16 %v48
  %v129 = vunpack.c.l.b16 %v49
  %v130 = vunpack.c.l.b16 %v50
  %v131 = vunpack.c.l.b16 %v51
  %v132 = vpack.c.b16 %v117, %v116
  %v133 = vpack.c.b16 %v119, %v118
  %v134 = vpack.c.b16 %v121, %v120
  %v135 = vpack.c.b16 %v123, %v122
  %v136 = vpack.c.b16 %v125, %v124
  %v137 = vpack.c.b16 %v127, %v126
  %v138 = vpack.c.b16 %v129, %v128
  %v139 = vpack.c.b16 %v131, %v130
  %148 = vmatpush.bf16.msra.mxu0 %v139
  %149 = vmatpush.bf16.msra.mxu0 %v138
  %150 = vmatpush.bf16.msra.mxu0 %v137
  %151 = vmatpush.bf16.msra.mxu0 %v136
  %152 = vmatpush.bf16.msra.mxu0 %v135
  %153 = vmatpush.bf16.msra.mxu0 %v134
  %154 = vmatpush.bf16.msra.mxu0 %v133
  %155 = vmatpush.bf16.msra.mxu0 %v132
  %156 = vmatmul.bf16.gmra.mxu0 %v84
  %v157 = vpop.f32.mrf.mxu0
  %v158 = vadd.f32 0.0, %v157
  %v159 = vpop.f32.mrf.mxu0
  %v160 = vadd.f32 0.0, %v159
  %161 = vmatmul.bf16.gmra.mxu0 %v85
  %v162 = vpop.f32.mrf.mxu0
  %v163 = vadd.f32 0.0, %v162
  %v164 = vpop.f32.mrf.mxu0
  %v165 = vadd.f32 0.0, %v164
  %166 = vmatmul.bf16.gmra.mxu0 %v86
  %v167 = vpop.f32.mrf.mxu0
  %v168 = vadd.f32 0.0, %v167
  %v169 = vpop.f32.mrf.mxu0
  %v170 = vadd.f32 0.0, %v169
  %171 = vmatmul.bf16.gmra.mxu0 %v87
  %v172 = vpop.f32.mrf.mxu0
  %v173 = vadd.f32 0.0, %v172
  %v174 = vpop.f32.mrf.mxu0
  %v175 = vadd.f32 0.0, %v174
  %176 = vmatmul.bf16.gmra.mxu0 %v88
  %v177 = vpop.f32.mrf.mxu0
  %v178 = vadd.f32 0.0, %v177
  %v179 = vpop.f32.mrf.mxu0
  %v180 = vadd.f32 0.0, %v179
  %181 = vmatmul.bf16.gmra.mxu0 %v89
  %v182 = vpop.f32.mrf.mxu0
  %v183 = vadd.f32 0.0, %v182
  %v184 = vpop.f32.mrf.mxu0
  %v185 = vadd.f32 0.0, %v184
  %186 = vmatmul.bf16.gmra.mxu0 %v90
  %v187 = vpop.f32.mrf.mxu0
  %v188 = vadd.f32 0.0, %v187
  %v189 = vpop.f32.mrf.mxu0
  %v190 = vadd.f32 0.0, %v189
  %191 = vmatmul.bf16.gmra.mxu0 %v91
  %v192 = vpop.f32.mrf.mxu0
  %v193 = vadd.f32 0.0, %v192
  %v194 = vpop.f32.mrf.mxu0
  %v195 = vadd.f32 0.0, %v194
  %196 = vdwg.mxu0
  %v197 = vld [vmem:[%s2] sm:$0xf]
  %v198 = vld [vmem:[%s3] sm:$0x1]
  %v200 = vperm.slane %v198, 0
  %vm202 = vcmask 31744
  %v204 = vsel %vm202, %v158, 0
  %v207 = vsel %vm202, %v160, 0
  %v210 = vsel %vm202, %v163, 0
  %v213 = vsel %vm202, %v165, 0
  %v216 = vsel %vm202, %v168, 0
  %v219 = vsel %vm202, %v170, 0
  %v222 = vsel %vm202, %v173, 0
  %v225 = vsel %vm202, %v175, 0
  %v228 = vsel %vm202, %v178, 0
  %v231 = vsel %vm202, %v180, 0
  %v234 = vsel %vm202, %v183, 0
  %v237 = vsel %vm202, %v185, 0
  %v240 = vsel %vm202, %v188, 0
  %v243 = vsel %vm202, %v190, 0
  %v246 = vsel %vm202, %v193, 0
  %v249 = vsel %vm202, %v195, 0
  %vm251 = vcmask 1043456
  %v253 = vsel %vm251, %v197, 0
  %255 = vmatpush.msra.mxu0 0.0
  %256 = vmatpush.msra.mxu0 0.0
  %257 = vmatpush.msra.mxu0 0.0
  %258 = vmatpush.msra.mxu0 0.0
  %259 = vmatpush.msra.mxu0 0.0
  %260 = vmatpush.msra.mxu0 0.0
  %261 = vmatpush.msra.mxu0 0.0
  %262 = vmatpush.msra.mxu0 0.0
  %263 = vmatpush.msra.mxu0 0.0
  %264 = vmatpush.msra.mxu0 0.0
  %265 = vmatpush.msra.mxu0 0.0
  %266 = vmatpush.msra.mxu0 0.0
  %267 = vmatpush.msra.mxu0 0.0
  %268 = vmatpush.msra.mxu0 0.0
  %269 = vmatpush.msra.mxu0 0.0
  %270 = vmatpush.msra.mxu0 %v253
  %271 = vmatmul.f32.gmra.mxu0 %v204
  %v272 = vpop.f32.mrf.mxu0
  %v273 = vadd.f32 %v200, %v272
  %274 = vmatmul.f32.gmra.mxu0 %v207
  %v275 = vpop.f32.mrf.mxu0
  %v276 = vadd.f32 %v200, %v275
  %277 = vmatmul.f32.gmra.mxu0 %v210
  %v278 = vpop.f32.mrf.mxu0
  %v279 = vadd.f32 %v200, %v278
  %280 = vmatmul.f32.gmra.mxu0 %v213
  %v281 = vpop.f32.mrf.mxu0
  %v282 = vadd.f32 %v200, %v281
  %283 = vmatmul.f32.gmra.mxu0 %v216
  %v284 = vpop.f32.mrf.mxu0
  %v285 = vadd.f32 %v200, %v284
  %286 = vmatmul.f32.gmra.mxu0 %v219
  %v287 = vpop.f32.mrf.mxu0
  %v288 = vadd.f32 %v200, %v287
  %289 = vmatmul.f32.gmra.mxu0 %v222
  %v290 = vpop.f32.mrf.mxu0
  %v291 = vadd.f32 %v200, %v290
  %292 = vmatmul.f32.gmra.mxu0 %v225
  %v293 = vpop.f32.mrf.mxu0
  %v294 = vadd.f32 %v200, %v293
  %295 = vmatmul.f32.gmra.mxu0 %v228
  %v296 = vpop.f32.mrf.mxu0
  %v297 = vadd.f32 %v200, %v296
  %298 = vmatmul.f32.gmra.mxu0 %v231
  %v299 = vpop.f32.mrf.mxu0
  %v300 = vadd.f32 %v200, %v299
  %301 = vmatmul.f32.gmra.mxu0 %v234
  %v302 = vpop.f32.mrf.mxu0
  %v303 = vadd.f32 %v200, %v302
  %304 = vmatmul.f32.gmra.mxu0 %v237
  %v305 = vpop.f32.mrf.mxu0
  %v306 = vadd.f32 %v200, %v305
  %307 = vmatmul.f32.gmra.mxu0 %v240
  %v308 = vpop.f32.mrf.mxu0
  %v309 = vadd.f32 %v200, %v308
  %310 = vmatmul.f32.gmra.mxu0 %v243
  %v311 = vpop.f32.mrf.mxu0
  %v312 = vadd.f32 %v200, %v311
  %313 = vmatmul.f32.gmra.mxu0 %v246
  %v314 = vpop.f32.mrf.mxu0
  %v315 = vadd.f32 %v200, %v314
  %316 = vmatmul.f32.gmra.mxu0 %v249
  %v317 = vpop.f32.mrf.mxu0
  %v318 = vadd.f32 %v200, %v317
  %319 = vdwg.mxu0
  %v320 = vmax.f32 %v273, 0.0
  %v321 = vmax.f32 %v276, 0.0
  %v322 = vmax.f32 %v279, 0.0
  %v323 = vmax.f32 %v282, 0.0
  %v324 = vmax.f32 %v285, 0.0
  %v325 = vmax.f32 %v288, 0.0
  %v326 = vmax.f32 %v291, 0.0
  %v327 = vmax.f32 %v294, 0.0
  %v328 = vmax.f32 %v297, 0.0
  %v329 = vmax.f32 %v300, 0.0
  %v330 = vmax.f32 %v303, 0.0
  %v331 = vmax.f32 %v306, 0.0
  %v332 = vmax.f32 %v309, 0.0
  %v333 = vmax.f32 %v312, 0.0
  %v334 = vmax.f32 %v315, 0.0
  %v335 = vmax.f32 %v318, 0.0
  %v336 = vld [vmem:[%s4] sm:$0xff]
  %v337 = vld [vmem:[%s4 + $0x8] sm:$0xff]
  %v338 = vld [vmem:[%s4 + $0x10] sm:$0xff]
  %v339 = vld [vmem:[%s4 + $0x18] sm:$0xff]
  %vm340 = vcmask 261120
  %v342 = vsel %vm340, %v320, 0
  %v345 = vsel %vm340, %v321, 0
  %v348 = vsel %vm340, %v322, 0
  %v351 = vsel %vm340, %v323, 0
  %v354 = vsel %vm340, %v324, 0
  %v357 = vsel %vm340, %v325, 0
  %v360 = vsel %vm340, %v326, 0
  %v363 = vsel %vm340, %v327, 0
  %v366 = vsel %vm340, %v328, 0
  %v369 = vsel %vm340, %v329, 0
  %v372 = vsel %vm340, %v330, 0
  %v375 = vsel %vm340, %v331, 0
  %v378 = vsel %vm340, %v332, 0
  %v381 = vsel %vm340, %v333, 0
  %v384 = vsel %vm340, %v334, 0
  %v387 = vsel %vm340, %v335, 0
  %389 = vmatpush.msra.mxu0 0.0
  %390 = vmatpush.msra.mxu0 0.0
  %391 = vmatpush.msra.mxu0 0.0
  %392 = vmatpush.msra.mxu0 0.0
  %393 = vmatpush.msra.mxu0 0.0
  %394 = vmatpush.msra.mxu0 0.0
  %395 = vmatpush.msra.mxu0 0.0
  %396 = vmatpush.msra.mxu0 0.0
  %397 = vmatpush.msra.mxu0 0.0
  %398 = vmatpush.msra.mxu0 0.0
  %399 = vmatpush.msra.mxu0 0.0
  %400 = vmatpush.msra.mxu0 0.0
  %401 = vmatpush.msra.mxu0 %v339
  %402 = vmatpush.msra.mxu0 %v338
  %403 = vmatpush.msra.mxu0 %v337
  %404 = vmatpush.msra.mxu0 %v336
  %405 = vmatmul.f32.gmra.mxu0 %v342
  %v406 = vpop.f32.mrf.mxu0
  %v407 = vadd.f32 0.0, %v406
  %408 = vmatmul.f32.gmra.mxu0 %v345
  %v409 = vpop.f32.mrf.mxu0
  %v410 = vadd.f32 0.0, %v409
  %411 = vmatmul.f32.gmra.mxu0 %v348
  %v412 = vpop.f32.mrf.mxu0
  %v413 = vadd.f32 0.0, %v412
  %414 = vmatmul.f32.gmra.mxu0 %v351
  %v415 = vpop.f32.mrf.mxu0
  %v416 = vadd.f32 0.0, %v415
  %417 = vmatmul.f32.gmra.mxu0 %v354
  %v418 = vpop.f32.mrf.mxu0
  %v419 = vadd.f32 0.0, %v418
  %420 = vmatmul.f32.gmra.mxu0 %v357
  %v421 = vpop.f32.mrf.mxu0
  %v422 = vadd.f32 0.0, %v421
  %423 = vmatmul.f32.gmra.mxu0 %v360
  %v424 = vpop.f32.mrf.mxu0
  %v425 = vadd.f32 0.0, %v424
  %426 = vmatmul.f32.gmra.mxu0 %v363
  %v427 = vpop.f32.mrf.mxu0
  %v428 = vadd.f32 0.0, %v427
  %429 = vmatmul.f32.gmra.mxu0 %v366
  %v430 = vpop.f32.mrf.mxu0
  %v431 = vadd.f32 0.0, %v430
  %432 = vmatmul.f32.gmra.mxu0 %v369
  %v433 = vpop.f32.mrf.mxu0
  %v434 = vadd.f32 0.0, %v433
  %435 = vmatmul.f32.gmra.mxu0 %v372
  %v436 = vpop.f32.mrf.mxu0
  %v437 = vadd.f32 0.0, %v436
  %438 = vmatmul.f32.gmra.mxu0 %v375
  %v439 = vpop.f32.mrf.mxu0
  %v440 = vadd.f32 0.0, %v439
  %441 = vmatmul.f32.gmra.mxu0 %v378
  %v442 = vpop.f32.mrf.mxu0
  %v443 = vadd.f32 0.0, %v442
  %444 = vmatmul.f32.gmra.mxu0 %v381
  %v445 = vpop.f32.mrf.mxu0
  %v446 = vadd.f32 0.0, %v445
  %447 = vmatmul.f32.gmra.mxu0 %v384
  %v448 = vpop.f32.mrf.mxu0
  %v449 = vadd.f32 0.0, %v448
  %450 = vmatmul.f32.gmra.mxu0 %v387
  %v451 = vpop.f32.mrf.mxu0
  %v452 = vadd.f32 0.0, %v451
  %453 = vdwg.mxu0
  %v454 = vpack.c.bf16 %v407, %v407
  %v455 = vpack.c.bf16 %v410, %v410
  %v456 = vpack.c.bf16 %v413, %v413
  %v457 = vpack.c.bf16 %v416, %v416
  %v458 = vpack.c.bf16 %v419, %v419
  %v459 = vpack.c.bf16 %v422, %v422
  %v460 = vpack.c.bf16 %v425, %v425
  %v461 = vpack.c.bf16 %v428, %v428
  %v462 = vpack.c.bf16 %v431, %v431
  %v463 = vpack.c.bf16 %v434, %v434
  %v464 = vpack.c.bf16 %v437, %v437
  %v465 = vpack.c.bf16 %v440, %v440
  %v466 = vpack.c.bf16 %v443, %v443
  %v467 = vpack.c.bf16 %v446, %v446
  %v468 = vpack.c.bf16 %v449, %v449
  %v469 = vpack.c.bf16 %v452, %v452
  %vm470 = vcmask 125952
  %471 = vst.msk [vmem:[%s5] sm:$0xf] %vm470, %v454
  %472 = vst.msk [vmem:[%s5 + $0x4] sm:$0xf] %vm470, %v455
  %473 = vst.msk [vmem:[%s5 + $0x8] sm:$0xf] %vm470, %v456
  %474 = vst.msk [vmem:[%s5 + $0xc] sm:$0xf] %vm470, %v457
  %475 = vst.msk [vmem:[%s5 + $0x10] sm:$0xf] %vm470, %v458
  %476 = vst.msk [vmem:[%s5 + $0x14] sm:$0xf] %vm470, %v459
  %477 = vst.msk [vmem:[%s5 + $0x18] sm:$0xf] %vm470, %v460
  %478 = vst.msk [vmem:[%s5 + $0x1c] sm:$0xf] %vm470, %v461
  %479 = vst.msk [vmem:[%s5 + $0x20] sm:$0xf] %vm470, %v462
  %480 = vst.msk [vmem:[%s5 + $0x24] sm:$0xf] %vm470, %v463
  %481 = vst.msk [vmem:[%s5 + $0x28] sm:$0xf] %vm470, %v464
  %482 = vst.msk [vmem:[%s5 + $0x2c] sm:$0xf] %vm470, %v465
  %483 = vst.msk [vmem:[%s5 + $0x30] sm:$0xf] %vm470, %v466
  %484 = vst.msk [vmem:[%s5 + $0x34] sm:$0xf] %vm470, %v467
  %485 = vst.msk [vmem:[%s5 + $0x38] sm:$0xf] %vm470, %v468
  %486 = vst.msk [vmem:[%s5 + $0x3c] sm:$0xf] %vm470, %v469
  // Predicated region
  $region22: #{net_forward.2} parent=0 // pred_check
    _
  $region23: #{net_forward.2} parent=0 // pred_check_branch
    %488 = sbr.rel (0) target = $region25
  $region24: #{net_forward.2} parent=0 // pred_region
    _
  $region25: #{net_forward.2} parent=0 // pred_fallthru
    _
  // Predicated region
  $region26: #{net_forward.2} parent=0 // pred_check
    _
  $region27: #{net_forward.2} parent=0 // pred_check_branch
    %490 = sbr.rel (0) target = $region29
  $region28: #{net_forward.2} parent=0 // pred_region
    _
  $region29: #{net_forward.2} parent=0 // pred_fallthru
    _

</llo_original>
